<compile_context>
chip_gen: v5e
topology: v5e:2x2
jax: 0.10.0
libtpu: 0.0.40
codegen_flags: <defaults>
</compile_context>

<pallas_src>
import functools

import jax
import jax.numpy as jnp
from jax.experimental import pallas as pl
from jax.experimental.pallas import tpu as pltpu

SIGMA = 0.1          # module hyper-parameter (matches the nn.Module ctor arg)
LANE = 512           # lane-dense slab width (multiple of 128)
ROW_BLOCK = 512      # 512 x 512 x f32 = 1 MiB per operand per pipeline buffer


def _add_scaled_noise_kernel(x_ref, n_ref, o_ref, *, sigma):
    # y = x + sigma * n, computed in the input dtype (bf16 stays bf16).
    o_ref[...] = (x_ref[...] + n_ref[...] * sigma).astype(o_ref.dtype)


def gaussian_noise(x, key, sigma=SIGMA, training=True):
    """Pallas implementation of GaussianNoise.forward.

    x:   (N, C, H, W) array (NCHW, matching the PyTorch module).
    key: jax.random key; callers should split it per training step so each
         step gets fresh noise (PyTorch draws fresh noise on every call).
    """
    if not training:
        return x

    orig_shape = x.shape
    total = x.size

    # ---- flatten to a lane-dense (rows, LANE) slab, padded to whole blocks.
    rows = pl.cdiv(total, LANE)
    if rows > ROW_BLOCK:
        bm = ROW_BLOCK
        rows_padded = pl.cdiv(rows, ROW_BLOCK) * ROW_BLOCK
    else:
        bm = rows                      # single full-extent block along rows
        rows_padded = rows
    padded_total = rows_padded * LANE

    x_flat = x.reshape(-1)
    if padded_total != total:
        x_flat = jnp.pad(x_flat, (0, padded_total - total))
    x2 = x_flat.reshape(rows_padded, LANE)

    # Exact N(0, 1) noise, independent for every element / block / step.
    noise2 = jax.random.normal(key, (rows_padded, LANE), dtype=x2.dtype)

    grid = (rows_padded // bm,)
    block = (bm, LANE)

    extra_kwargs = {}
    if jax.default_backend() == "tpu":
        # In-place update when the caller donates the input (free memory-
        # footprint win on real hardware); skipped under CPU emulation to
        # keep the portable/interpret path as simple as possible.
        extra_kwargs["input_output_aliases"] = {0: 0}

    out2 = pl.pallas_call(
        functools.partial(_add_scaled_noise_kernel, sigma=float(sigma)),
        out_shape=jax.ShapeDtypeStruct(x2.shape, x2.dtype),
        grid=grid,
        in_specs=[
            pl.BlockSpec(block, lambda i: (i, 0)),   # x tile
            pl.BlockSpec(block, lambda i: (i, 0)),   # noise tile
        ],
        out_specs=pl.BlockSpec(block, lambda i: (i, 0)),
        compiler_params=pltpu.CompilerParams(
            # Pure elementwise op, no reduction axis -> shard the grid
            # across both v7x TensorCores (no-op on v5e/v6e).
            dimension_semantics=("parallel",)),
        **extra_kwargs,
    )(x2, noise2)

    return out2.reshape(-1)[:total].reshape(orig_shape)


if __name__ == "__main__":
    key = jax.random.PRNGKey(0)
    kx, knoise = jax.random.split(key)

    # Small NCHW input consistent with the module's use inside a CNN.
    x = jax.random.normal(kx, (2, 4, 16, 16), dtype=jnp.float32)

    # Training path: noise is fused into the output by the Pallas kernel.
    y_train = gaussian_noise(x, knoise, sigma=SIGMA, training=True)
    y_train = jax.block_until_ready(y_train)
    assert y_train.shape == x.shape and y_train.dtype == x.dtype

    # Sanity: the injected noise has roughly the requested scale (std ~ SIGMA).
    noise_std = float(jnp.std(y_train - x))
    assert 0.25 * SIGMA < noise_std < 4.0 * SIGMA, noise_std

    # Eval path: identity.
    y_eval = gaussian_noise(x, knoise, sigma=SIGMA, training=False)
    y_eval = jax.block_until_ready(y_eval)
    assert bool(jnp.all(y_eval == x))

    print("KERNEL_OK")
</pallas_src>

<mosaic_0001>
module attributes {stable_mosaic.version = 11 : i64} {
  func.func @_add_scaled_noise_kernel(%arg0: i32, %arg1: memref<4x512xf32, #tpu.memory_space<vmem>>, %arg2: memref<4x512xf32, #tpu.memory_space<vmem>>, %arg3: memref<4x512xf32, #tpu.memory_space<vmem>>) attributes {dimension_semantics = [#tpu.dimension_semantics<parallel>], iteration_bounds = array<i64: 1>, scalar_prefetch = 0 : i64, scratch_operands = 0 : i64, tpu.core_type = #tpu.core_type<tc>, window_params = [{transform_indices = @transform_0, window_bounds = array<i64: 4, 512>}, {transform_indices = @transform_1, window_bounds = array<i64: 4, 512>}, {transform_indices = @transform_2, window_bounds = array<i64: 4, 512>}]} {
    %c0 = arith.constant 0 : index
    %c0_0 = arith.constant 0 : index
    %0 = vector.load %arg1[%c0, %c0_0] : memref<4x512xf32, #tpu.memory_space<vmem>>, vector<4x512xf32>
    %c0_1 = arith.constant 0 : index
    %c0_2 = arith.constant 0 : index
    %1 = vector.load %arg2[%c0_1, %c0_2] : memref<4x512xf32, #tpu.memory_space<vmem>>, vector<4x512xf32>
    %cst = arith.constant 1.000000e-01 : f32
    %2 = vector.broadcast %cst : f32 to vector<4x512xf32>
    %3 = arith.mulf %1, %2 : vector<4x512xf32>
    %4 = arith.addf %0, %3 : vector<4x512xf32>
    %c0_3 = arith.constant 0 : index
    %c0_4 = arith.constant 0 : index
    %5 = vector.load %arg3[%c0_3, %c0_4] : memref<4x512xf32, #tpu.memory_space<vmem>>, vector<4x512xf32>
    tpu.vector_store %arg3[%c0_3, %c0_4], %4 {strides = array<i32>} : memref<4x512xf32, #tpu.memory_space<vmem>>, vector<4x512xf32>,
    return
  }
  func.func @transform_0(%arg0: i32) -> (i32, i32) {
    %c0_i32 = arith.constant 0 : i32
    %c0_i32_0 = arith.constant 0 : i32
    return %arg0, %c0_i32 : i32, i32
  }
  func.func @transform_1(%arg0: i32) -> (i32, i32) {
    %c0_i32 = arith.constant 0 : i32
    %c0_i32_0 = arith.constant 0 : i32
    return %arg0, %c0_i32 : i32, i32
  }
  func.func @transform_2(%arg0: i32) -> (i32, i32) {
    %c0_i32 = arith.constant 0 : i32
    %c0_i32_0 = arith.constant 0 : i32
    return %arg0, %c0_i32 : i32, i32
  }
}

</mosaic_0001>

<llo_original>
// kernel: tpu_custom_call.1
$region0: #{tpu_custom_call.1}
  #allocation0 [shape = 'u32[]', space=smem, size = 0x4, offset = 0x4, fixed_abs, tag = 'smem constant byte address 0x4 - core index']
  #allocation1 [shape = 'u32[72,128]{1,0:T(1,128)}', space=vmem, size = 0x9000, scoped, tag = 'internal scratch']
  %s0 = inlined_call_operand.hbm [shape: f32[4,512], index: 0, kind: input, shape index: {}]
  %s1 = inlined_call_operand.hbm [shape: f32[4,512], index: 1, kind: input, shape index: {}]
  %s2 = inlined_call_operand.hbm [shape: f32[4,512], index: 2, kind: output, shape index: {}]
  %s3 = sld [smem:[#allocation0]]
  $region26: #{tpu_custom_call.1} parent=0
    _
  %s5 = ssub.s32 1, %s3
  %s6 = scalar_select 0, %s5, %s3
  $region1: #{tpu_custom_call.1} parent=0
    #allocation2 [shape = 'u8[8192]{0}', space=vmem, size = 0x2000, scoped, tag = 'input window, operand 0, single buffered']
    #allocation3 [shape = 's32[1]{0}', space=sflag, size = 0x4, scoped, tag = 'scoped memory for tpu_custom_call.1']
    #allocation4 [shape = 's32[1]{0}', space=sflag, size = 0x4, scoped, tag = 'scoped memory for tpu_custom_call.1']
    #allocation5 [shape = 'u8[8192]{0}', space=vmem, size = 0x2000, scoped, tag = 'input window, operand 1, single buffered']
    #allocation6 [shape = 's32[1]{0}', space=sflag, size = 0x4, scoped, tag = 'scoped memory for tpu_custom_call.1']
    #allocation7 [shape = 'u8[8192]{0}', space=vmem, size = 0x2000, scoped, tag = 'output window, operand 0, single buffered']
    %7 = vsyncpa [#allocation3], 0
    %8 = vsyncpa [#allocation6], 0
    %9 = vsyncpa [#allocation4], 0
    // Predicated region
    $region2: #{tpu_custom_call.1} parent=1 // pred_check
      _
    $region3: #{tpu_custom_call.1} parent=1 // pred_check_branch
      %11 = sbr.rel (0) target = $region5
    $region4: #{tpu_custom_call.1} parent=1 // pred_region
      %13 = vsyncadd [#allocation3], 0
      %s15 = sshll.u32 %s0, 4
      %s16 = int_to_ptr.hbm [resolvable:$true] %s15
      %s17 = sshll.u32 [#allocation2], 4
      %s18 = int_to_ptr.vmem [resolvable:$true] %s17
      %20 = dma.hbm_to_vmem [thread:$0]  %s16, 256, %s18, [#allocation3]
    $region5: #{tpu_custom_call.1} parent=1 // pred_fallthru
      _
    // Predicated region
    $region6: #{tpu_custom_call.1} parent=1 // pred_check
      _
    $region7: #{tpu_custom_call.1} parent=1 // pred_check_branch
      %22 = sbr.rel (0) target = $region9
    $region8: #{tpu_custom_call.1} parent=1 // pred_region
      %24 = vsyncadd [#allocation6], 0
      %s26 = sshll.u32 %s1, 4
      %s27 = int_to_ptr.hbm [resolvable:$true] %s26
      %s28 = sshll.u32 [#allocation5], 4
      %s29 = int_to_ptr.vmem [resolvable:$true] %s28
      %31 = dma.hbm_to_vmem [thread:$0]  %s27, 256, %s29, [#allocation6]
    $region9: #{tpu_custom_call.1} parent=1 // pred_fallthru
      _
    // Predicated region
    $region10: #{tpu_custom_call.1} parent=1 // pred_check
      _
    $region11: #{tpu_custom_call.1} parent=1 // pred_check_branch
      %33 = sbr.rel (0) target = $region13
    $region12: #{tpu_custom_call.1} parent=1 // pred_region
      %35 = dma.done [#allocation3], 256
    $region13: #{tpu_custom_call.1} parent=1 // pred_fallthru
      _
    // Predicated region
    $region14: #{tpu_custom_call.1} parent=1 // pred_check
      _
    $region15: #{tpu_custom_call.1} parent=1 // pred_check_branch
      %37 = sbr.rel (0) target = $region17
    $region16: #{tpu_custom_call.1} parent=1 // pred_region
      %39 = dma.done [#allocation6], 256
    $region17: #{tpu_custom_call.1} parent=1 // pred_fallthru
      _
    %v40 = vld [vmem:[#allocation2] sm:$0xff]
    %v41 = vld [vmem:[#allocation2 + $0x8] sm:$0xff]
    %v42 = vld [vmem:[#allocation5] sm:$0xff]
    %v43 = vld [vmem:[#allocation5 + $0x8] sm:$0xff]
    %v44 = vmul.f32 %v42, 0.1
    %v45 = vmul.f32 %v43, 0.1
    %v46 = vadd.f32 %v40, %v44
    %v47 = vadd.f32 %v41, %v45
    %48 = vst [vmem:[#allocation7] sm:$0xff] %v46
    %49 = vst [vmem:[#allocation7 + $0x8] sm:$0xff] %v47
    // Predicated region
    $region18: #{tpu_custom_call.1} parent=1 // pred_check
      _
    $region19: #{tpu_custom_call.1} parent=1 // pred_check_branch
      %51 = sbr.rel (0) target = $region21
    $region20: #{tpu_custom_call.1} parent=1 // pred_region
      %53 = vsyncadd [#allocation4], 0
      %s55 = sshll.u32 [#allocation7], 4
      %s56 = int_to_ptr.vmem [resolvable:$true] %s55
      %s57 = sshll.u32 %s2, 4
      %s58 = int_to_ptr.hbm [resolvable:$true] %s57
      %60 = dma.vmem_to_hbm [thread:$0]  %s56, 256, %s58, [#allocation4]
    $region21: #{tpu_custom_call.1} parent=1 // pred_fallthru
      _
    // Predicated region
    $region22: #{tpu_custom_call.1} parent=1 // pred_check
      _
    $region23: #{tpu_custom_call.1} parent=1 // pred_check_branch
      %62 = sbr.rel (0) target = $region25
    $region24: #{tpu_custom_call.1} parent=1 // pred_region
      %64 = dma.done [#allocation4], 256
    $region25: #{tpu_custom_call.1} parent=1 // pred_fallthru
      _
    %65 = vsyncpa [#allocation3], 1
    %66 = vsyncpa [#allocation6], 1
    %67 = vsyncpa [#allocation4], 1

</llo_original>
